<compile_context>
chip_gen: v7x
topology: tpu7x:2x2x1
jax: 0.10.0
libtpu: 0.0.40
codegen_flags: <defaults>
</compile_context>

<pallas_src>
import jax
import jax.numpy as jnp
import numpy as np
from jax.experimental import pallas as pl
from jax.experimental.pallas import tpu as pltpu

INPUT_SIZE = 5
OUTPUT_SIZE = 2


def _linear_kernel(x_ref, w_ref, b_ref, o_ref):
    # x_ref: (B, K)  w_ref: (K, N)  b_ref: (1, N)  o_ref: (B, N)
    x = x_ref[...].astype(jnp.float32)
    w = w_ref[...].astype(jnp.float32)
    k_dim = x_ref.shape[1]

    # Accumulator starts at the bias, broadcast (1, N) -> (B, N).
    acc = jnp.broadcast_to(b_ref[...].astype(jnp.float32), o_ref.shape)

    # K is tiny (5): unrolled VPU broadcast multiply-adds, no MXU tile needed.
    for k in range(k_dim):
        acc = acc + x[:, k:k + 1] * w[k:k + 1, :]

    o_ref[...] = acc.astype(o_ref.dtype)


@jax.jit
def linear_pallas(x, w_t, b_row):
    """y = x @ w_t + b_row, i.e. torch nn.Linear forward with w_t = weight.T.

    x:     (B, in_features)      float32
    w_t:   (in_features, out)    float32   (pre-transposed once at init time)
    b_row: (1, out)              float32   (pre-shaped once at init time)
    """
    B, K = x.shape
    K2, N = w_t.shape
    assert K == K2 and b_row.shape == (1, N)

    cost = pl.CostEstimate(
        flops=2 * B * K * N,
        transcendentals=0,
        bytes_accessed=4 * (B * K + K * N + N + B * N),
    )

    return pl.pallas_call(
        _linear_kernel,
        out_shape=jax.ShapeDtypeStruct((B, N), jnp.float32),
        in_specs=[
            pl.BlockSpec(memory_space=pltpu.MemorySpace.VMEM),
            pl.BlockSpec(memory_space=pltpu.MemorySpace.VMEM),
            pl.BlockSpec(memory_space=pltpu.MemorySpace.VMEM),
        ],
        out_specs=pl.BlockSpec(memory_space=pltpu.MemorySpace.VMEM),
        cost_estimate=cost,
    )(x, w_t, b_row)


def init_params(key, in_features, out_features):
    """Deterministic init mimicking torch nn.Linear default (uniform +-1/sqrt(fan_in))."""
    k_w, k_b = jax.random.split(key)
    bound = 1.0 / np.sqrt(in_features)
    weight = jax.random.uniform(k_w, (out_features, in_features),
                                minval=-bound, maxval=bound, dtype=jnp.float32)
    bias = jax.random.uniform(k_b, (out_features,),
                              minval=-bound, maxval=bound, dtype=jnp.float32)
    return weight, bias


if __name__ == "__main__":
    key = jax.random.PRNGKey(0)
    k_x, k_p = jax.random.split(key)

    batch = 8
    x = jax.random.normal(k_x, (batch, INPUT_SIZE), dtype=jnp.float32)
    weight, bias = init_params(k_p, INPUT_SIZE, OUTPUT_SIZE)

    # One-time kernel-layout of the parameters (done at init, not per forward call).
    w_t = jnp.asarray(weight.T)           # (in_features, out_features)
    b_row = jnp.asarray(bias[None, :])    # (1, out_features)

    out = linear_pallas(x, w_t, b_row)
    out = jax.block_until_ready(out)

    # Reference check against plain JAX (same semantics as torch nn.Linear forward).
    ref = x @ weight.T + bias
    np.testing.assert_allclose(np.asarray(out), np.asarray(ref), rtol=1e-5, atol=1e-5)
    assert out.shape == (batch, OUTPUT_SIZE)

    print("KERNEL_OK")
</pallas_src>

<mosaic_0001>
module attributes {stable_mosaic.version = 11 : i64} {
  func.func @_linear_kernel(%arg0: memref<8x5xf32, #tpu.memory_space<vmem>>, %arg1: memref<5x2xf32, #tpu.memory_space<vmem>>, %arg2: memref<1x2xf32, #tpu.memory_space<vmem>>, %arg3: memref<8x2xf32, #tpu.memory_space<vmem>>) attributes {dimension_semantics = [], scalar_prefetch = 0 : i64, scratch_operands = 0 : i64, tpu.core_type = #tpu.core_type<tc>} {
    %c0 = arith.constant 0 : index
    %c0_0 = arith.constant 0 : index
    %0 = vector.load %arg0[%c0, %c0_0] : memref<8x5xf32, #tpu.memory_space<vmem>>, vector<8x5xf32>
    %c0_1 = arith.constant 0 : index
    %c0_2 = arith.constant 0 : index
    %1 = vector.load %arg1[%c0_1, %c0_2] : memref<5x2xf32, #tpu.memory_space<vmem>>, vector<5x2xf32>
    %c0_3 = arith.constant 0 : index
    %c0_4 = arith.constant 0 : index
    %2 = vector.load %arg2[%c0_3, %c0_4] : memref<1x2xf32, #tpu.memory_space<vmem>>, vector<1x2xf32>
    %3 = vector.shape_cast %2 : vector<1x2xf32> to vector<1x2xf32>
    %4 = vector.broadcast %3 : vector<1x2xf32> to vector<8x2xf32>
    %5 = vector.extract_strided_slice %0 {offsets = [0, 0], sizes = [8, 1], strides = [1, 1]} : vector<8x5xf32> to vector<8x1xf32>
    %6 = vector.extract_strided_slice %1 {offsets = [0, 0], sizes = [1, 2], strides = [1, 1]} : vector<5x2xf32> to vector<1x2xf32>
    %7 = vector.broadcast %5 : vector<8x1xf32> to vector<8x2xf32>
    %8 = vector.broadcast %6 : vector<1x2xf32> to vector<8x2xf32>
    %9 = arith.mulf %7, %8 : vector<8x2xf32>
    %10 = arith.addf %4, %9 : vector<8x2xf32>
    %11 = vector.extract_strided_slice %0 {offsets = [0, 1], sizes = [8, 1], strides = [1, 1]} : vector<8x5xf32> to vector<8x1xf32>
    %12 = vector.extract_strided_slice %1 {offsets = [1, 0], sizes = [1, 2], strides = [1, 1]} : vector<5x2xf32> to vector<1x2xf32>
    %13 = vector.broadcast %11 : vector<8x1xf32> to vector<8x2xf32>
    %14 = vector.broadcast %12 : vector<1x2xf32> to vector<8x2xf32>
    %15 = arith.mulf %13, %14 : vector<8x2xf32>
    %16 = arith.addf %10, %15 : vector<8x2xf32>
    %17 = vector.extract_strided_slice %0 {offsets = [0, 2], sizes = [8, 1], strides = [1, 1]} : vector<8x5xf32> to vector<8x1xf32>
    %18 = vector.extract_strided_slice %1 {offsets = [2, 0], sizes = [1, 2], strides = [1, 1]} : vector<5x2xf32> to vector<1x2xf32>
    %19 = vector.broadcast %17 : vector<8x1xf32> to vector<8x2xf32>
    %20 = vector.broadcast %18 : vector<1x2xf32> to vector<8x2xf32>
    %21 = arith.mulf %19, %20 : vector<8x2xf32>
    %22 = arith.addf %16, %21 : vector<8x2xf32>
    %23 = vector.extract_strided_slice %0 {offsets = [0, 3], sizes = [8, 1], strides = [1, 1]} : vector<8x5xf32> to vector<8x1xf32>
    %24 = vector.extract_strided_slice %1 {offsets = [3, 0], sizes = [1, 2], strides = [1, 1]} : vector<5x2xf32> to vector<1x2xf32>
    %25 = vector.broadcast %23 : vector<8x1xf32> to vector<8x2xf32>
    %26 = vector.broadcast %24 : vector<1x2xf32> to vector<8x2xf32>
    %27 = arith.mulf %25, %26 : vector<8x2xf32>
    %28 = arith.addf %22, %27 : vector<8x2xf32>
    %29 = vector.extract_strided_slice %0 {offsets = [0, 4], sizes = [8, 1], strides = [1, 1]} : vector<8x5xf32> to vector<8x1xf32>
    %30 = vector.extract_strided_slice %1 {offsets = [4, 0], sizes = [1, 2], strides = [1, 1]} : vector<5x2xf32> to vector<1x2xf32>
    %31 = vector.broadcast %29 : vector<8x1xf32> to vector<8x2xf32>
    %32 = vector.broadcast %30 : vector<1x2xf32> to vector<8x2xf32>
    %33 = arith.mulf %31, %32 : vector<8x2xf32>
    %34 = arith.addf %28, %33 : vector<8x2xf32>
    %c0_5 = arith.constant 0 : index
    %c0_6 = arith.constant 0 : index
    %35 = vector.load %arg3[%c0_5, %c0_6] : memref<8x2xf32, #tpu.memory_space<vmem>>, vector<8x2xf32>
    tpu.vector_store %arg3[%c0_5, %c0_6], %34 {strides = array<i32>} : memref<8x2xf32, #tpu.memory_space<vmem>>, vector<8x2xf32>,
    return
  }
}

</mosaic_0001>

<llo_original>
// kernel: linear_pallas.1
$region0: #{linear_pallas.1}
  #allocation0 [shape = 'u32[]', space=smem, size = 0x4, offset = 0x4, fixed_abs, tag = 'smem constant byte address 0x4 - core index']
  #allocation1 [shape = 'u32[144,128]{1,0:T(1,128)}', space=vmem, size = 0x12000, scoped, tag = 'internal scratch']
  %s0 = inlined_call_operand.vmem [shape: f32[8,5], index: 0, kind: input, shape index: {}]
  %s1 = inlined_call_operand.vmem [shape: f32[5,2], index: 1, kind: input, shape index: {}]
  %s2 = inlined_call_operand.vmem [shape: f32[1,2], index: 2, kind: input, shape index: {}]
  %s3 = inlined_call_operand.vmem [shape: f32[8,2], index: 3, kind: output, shape index: {}]
  %s4 = sld [smem:[#allocation0]]
  $region22: #{linear_pallas.1} parent=0
    _
  %s6 = ssub.s32 1, %s4
  %s7 = scalar_select 0, %s6, %s4
  // Predicated region
  $region2: #{linear_pallas.1} parent=0 // pred_check
    _
  $region3: #{linear_pallas.1} parent=0 // pred_check_branch
    %9 = sbr.rel (0) target = $region5
  $region4: #{linear_pallas.1} parent=0 // pred_region
    _
  $region5: #{linear_pallas.1} parent=0 // pred_fallthru
    _
  // Predicated region
  $region6: #{linear_pallas.1} parent=0 // pred_check
    _
  $region7: #{linear_pallas.1} parent=0 // pred_check_branch
    %11 = sbr.rel (0) target = $region9
  $region8: #{linear_pallas.1} parent=0 // pred_region
    _
  $region9: #{linear_pallas.1} parent=0 // pred_fallthru
    _
  // Predicated region
  $region10: #{linear_pallas.1} parent=0 // pred_check
    _
  $region11: #{linear_pallas.1} parent=0 // pred_check_branch
    %13 = sbr.rel (0) target = $region13
  $region12: #{linear_pallas.1} parent=0 // pred_region
    _
  $region13: #{linear_pallas.1} parent=0 // pred_fallthru
    _
  %v14 = vld [vmem:[%s0] sm:$0xff]
  %v15 = vld [vmem:[%s1] sm:$0x1f]
  %v16 = vld [vmem:[%s2] sm:$0x1]
  %v18 = vlaneseq
  %v19 = vshrl.u32 %v18, 7
  %v20 = vsub.s32 0, %v19
  %v21 = vrot.slane %v16, %v20
  %24 = vset.pattern.permute.xlu0 0
  %25 = vperm.xlu0 %24, %v14
  %v26 = vpop.permute.xlu0 %25
  %v28 = vlaneseq
  %v29 = vshrl.u32 %v28, 7
  %v30 = vsub.s32 0, %v29
  %v31 = vrot.slane %v15, %v30
  %v32 = vmul.f32 %v26, %v31
  %v33 = vadd.f32 %v21, %v32
  %34 = vset.pattern.permute.xlu0 1
  %35 = vperm.xlu0 %34, %v14
  %v36 = vpop.permute.xlu0 %35
  %v38 = vlaneseq
  %v39 = vshrl.u32 %v38, 7
  %v40 = vsub.s32 1, %v39
  %v41 = vrot.slane %v15, %v40
  %v42 = vmul.f32 %v36, %v41
  %v43 = vadd.f32 %v33, %v42
  %44 = vset.pattern.permute.xlu0 2
  %45 = vperm.xlu0 %44, %v14
  %v46 = vpop.permute.xlu0 %45
  %v48 = vlaneseq
  %v49 = vshrl.u32 %v48, 7
  %v50 = vsub.s32 2, %v49
  %v51 = vrot.slane %v15, %v50
  %v52 = vmul.f32 %v46, %v51
  %v53 = vadd.f32 %v43, %v52
  %54 = vset.pattern.permute.xlu0 3
  %55 = vperm.xlu0 %54, %v14
  %v56 = vpop.permute.xlu0 %55
  %v58 = vlaneseq
  %v59 = vshrl.u32 %v58, 7
  %v60 = vsub.s32 3, %v59
  %v61 = vrot.slane %v15, %v60
  %v62 = vmul.f32 %v56, %v61
  %v63 = vadd.f32 %v53, %v62
  %64 = vset.pattern.permute.xlu0 4
  %65 = vperm.xlu0 %64, %v14
  %v66 = vpop.permute.xlu0 %65
  %v68 = vlaneseq
  %v69 = vshrl.u32 %v68, 7
  %v70 = vsub.s32 4, %v69
  %v71 = vrot.slane %v15, %v70
  %v72 = vmul.f32 %v66, %v71
  %v73 = vadd.f32 %v63, %v72
  %vm74 = vcmask 15360
  %75 = vst.msk [vmem:[%s3] sm:$0xff] %vm74, %v73
  // Predicated region
  $region14: #{linear_pallas.1} parent=0 // pred_check
    _
  $region15: #{linear_pallas.1} parent=0 // pred_check_branch
    %77 = sbr.rel (0) target = $region17
  $region16: #{linear_pallas.1} parent=0 // pred_region
    _
  $region17: #{linear_pallas.1} parent=0 // pred_fallthru
    _
  // Predicated region
  $region18: #{linear_pallas.1} parent=0 // pred_check
    _
  $region19: #{linear_pallas.1} parent=0 // pred_check_branch
    %79 = sbr.rel (0) target = $region21
  $region20: #{linear_pallas.1} parent=0 // pred_region
    _
  $region21: #{linear_pallas.1} parent=0 // pred_fallthru
    _

</llo_original>
